<compile_context>
chip_gen: v6e
topology: v6e:2x2x1
jax: 0.10.0
libtpu: 0.0.40
codegen_flags: <defaults>
</compile_context>

<pallas_src>
import functools

import jax
import jax.numpy as jnp
from jax.experimental import pallas as pl
from jax.experimental.pallas import tpu as pltpu

_NEG_PAD = -1e30   # fill for vocab columns >= V; exp(pad - max) underflows to 0
_LANE = 128
_SUBLANE = 8


def _round_up(x, m):
    return ((x + m - 1) // m) * m


def pad_table(table):
    """Pad the (V, V) embedding table to (Vpad, Vpad), Vpad = round_up(V, 128).

    Padded columns get _NEG_PAD (ignored by the fused logsumexp); padded rows
    get 0 (never gathered since token ids < V).  Call ONCE at parameter setup,
    not per forward call (review: hoist the pad out of the hot path).
    """
    V = table.shape[0]
    vpad = _round_up(V, _LANE)
    t = table.astype(jnp.float32)
    t = jnp.pad(t, ((0, 0), (0, vpad - V)), constant_values=_NEG_PAD)
    t = jnp.pad(t, ((0, vpad - V), (0, 0)))
    return t


def _gather_rows(idx_smem, table_ref, logits_ref, tile_bt):
    """Exact row gather: logits_ref[r] = table_ref[idx[tile_base + r]].

    Token ids come from SMEM (scalar prefetch); the table and the logits tile
    are both VMEM-resident, so each iteration is a cheap in-VMEM row copy.
    """
    base = pl.program_id(0) * tile_bt

    def body(r, carry):
        tok = idx_smem[base + r]
        logits_ref[pl.ds(r, 1), :] = table_ref[pl.ds(tok, 1), :]
        return carry

    jax.lax.fori_loop(0, tile_bt, body, 0)


def bigram_logits_kernel(idx_smem, table_ref, logits_ref):
    _gather_rows(idx_smem, table_ref, logits_ref, logits_ref.shape[0])


def bigram_loss_kernel(idx_smem, tgt_ref, table_ref, logits_ref, partial_ref,
                       *, total_rows):
    tile_bt, vpad = logits_ref.shape

    # Gather this tile's logits rows (lane-dense (TILE_BT, Vpad) store).
    _gather_rows(idx_smem, table_ref, logits_ref, tile_bt)

    # Fused, vectorized cross-entropy over the tile.
    logits = logits_ref[...]                                   # (tile_bt, vpad) f32
    tgt = tgt_ref[...]                                         # (tile_bt, 1) i32
    col = jax.lax.broadcasted_iota(jnp.int32, (tile_bt, vpad), 1)

    m = jnp.max(logits, axis=-1, keepdims=True)                # (tile_bt, 1)
    lse = jnp.log(jnp.sum(jnp.exp(logits - m), axis=-1, keepdims=True)) + m
    picked = jnp.sum(jnp.where(col == tgt, logits, 0.0), axis=-1, keepdims=True)
    nll = lse - picked                                         # (tile_bt, 1)

    # Mask rows beyond B*T (padding of the last tile).
    row_ids = (pl.program_id(0) * tile_bt
               + jax.lax.broadcasted_iota(jnp.int32, (tile_bt, 1), 0))
    nll = jnp.where(row_ids < total_rows, nll, 0.0)

    # Per-tile partial sum -> own output block (no serial accumulator, so the
    # grid axis stays "parallel" / megacore-friendly).
    partial_ref[...] = jnp.sum(nll, axis=0, keepdims=True).reshape(1, 1, 1)


def bigram_forward(idx, table_padded, vocab_size, targets=None, tile_bt=256):
    """Mirror of BigramLanguageModel.forward.

    idx:          (B, T) integer token ids
    table_padded: (Vpad, Vpad) f32 table from pad_table() (pad once, reuse)
    vocab_size:   V
    targets:      optional (B, T) integer token ids

    Returns (logits, loss):
      - targets is None: logits shape (B, T, V), loss is None
      - else:            logits shape (B*T, V), loss is a scalar
    """
    B, T = idx.shape
    V = vocab_size
    vpad = table_padded.shape[1]
    BT = B * T

    tile_bt = min(tile_bt, _round_up(BT, _SUBLANE))
    tile_bt = _round_up(tile_bt, _SUBLANE)
    bt_pad = _round_up(BT, tile_bt)
    num_tiles = bt_pad // tile_bt

    idx_flat = jnp.pad(idx.reshape(BT).astype(jnp.int32), (0, bt_pad - BT))

    if targets is None:
        grid_spec = pltpu.PrefetchScalarGridSpec(
            num_scalar_prefetch=1,
            grid=(num_tiles,),
            in_specs=[
                # Table resident in VMEM for the whole grid (fetched once).
                pl.BlockSpec((vpad, vpad), lambda i, idx_ref: (0, 0)),
            ],
            out_specs=pl.BlockSpec((tile_bt, vpad), lambda i, idx_ref: (i, 0)),
        )
        logits_p = pl.pallas_call(
            bigram_logits_kernel,
            out_shape=jax.ShapeDtypeStruct((bt_pad, vpad), jnp.float32),
            grid_spec=grid_spec,
            compiler_params=pltpu.CompilerParams(
                dimension_semantics=("parallel",)),
        )(idx_flat, table_padded)
        logits = logits_p[:BT, :V].reshape(B, T, V)
        return logits, None

    tgt_col = jnp.pad(targets.reshape(BT).astype(jnp.int32),
                      (0, bt_pad - BT)).reshape(bt_pad, 1)

    grid_spec = pltpu.PrefetchScalarGridSpec(
        num_scalar_prefetch=1,
        grid=(num_tiles,),
        in_specs=[
            pl.BlockSpec((tile_bt, 1), lambda i, idx_ref: (i, 0)),
            pl.BlockSpec((vpad, vpad), lambda i, idx_ref: (0, 0)),
        ],
        out_specs=(
            pl.BlockSpec((tile_bt, vpad), lambda i, idx_ref: (i, 0)),
            pl.BlockSpec((1, 1, 1), lambda i, idx_ref: (i, 0, 0)),
        ),
    )
    logits_p, partials = pl.pallas_call(
        functools.partial(bigram_loss_kernel, total_rows=BT),
        out_shape=(jax.ShapeDtypeStruct((bt_pad, vpad), jnp.float32),
                   jax.ShapeDtypeStruct((num_tiles, 1, 1), jnp.float32)),
        grid_spec=grid_spec,
        compiler_params=pltpu.CompilerParams(
            dimension_semantics=("parallel",)),
    )(idx_flat, tgt_col, table_padded)

    logits = logits_p[:BT, :V]
    loss = jnp.sum(partials) / jnp.float32(BT)
    return logits, loss


def _reference_forward(idx, table, targets=None):
    """Pure-JAX reference for correctness checking."""
    logits = table[idx]                                            # (B, T, V)
    if targets is None:
        return logits, None
    B, T, V = logits.shape
    lg = logits.reshape(B * T, V)
    tg = targets.reshape(B * T)
    lse = jax.scipy.special.logsumexp(lg, axis=-1)
    picked = jnp.take_along_axis(lg, tg[:, None], axis=-1)[:, 0]
    return lg, jnp.mean(lse - picked)


if __name__ == "__main__":
    key = jax.random.PRNGKey(0)
    k_table, k_idx, k_tgt = jax.random.split(key, 3)

    vocab_size = 65    # e.g. tiny-shakespeare char vocab
    B, T = 2, 8

    # nn.Embedding default init: N(0, 1)
    table = jax.random.normal(k_table, (vocab_size, vocab_size),
                              dtype=jnp.float32)
    idx = jax.random.randint(k_idx, (B, T), 0, vocab_size, dtype=jnp.int32)
    targets = jax.random.randint(k_tgt, (B, T), 0, vocab_size, dtype=jnp.int32)

    # Pad the table ONCE (hoisted out of the per-call forward).
    table_p = pad_table(table)

    # Path 1: targets=None -> logits only, shape (B, T, V)
    logits_bt, loss_none = bigram_forward(idx, table_p, vocab_size, None)
    logits_bt = jax.block_until_ready(logits_bt)
    assert logits_bt.shape == (B, T, vocab_size)
    assert loss_none is None

    # Path 2: with targets -> logits (B*T, V) + scalar cross-entropy loss
    logits_flat, loss = bigram_forward(idx, table_p, vocab_size, targets)
    logits_flat = jax.block_until_ready(logits_flat)
    loss = jax.block_until_ready(loss)
    assert logits_flat.shape == (B * T, vocab_size)

    # Check against pure-JAX reference
    ref_logits_bt, _ = _reference_forward(idx, table, None)
    ref_logits_flat, ref_loss = _reference_forward(idx, table, targets)
    assert jnp.allclose(logits_bt, ref_logits_bt, atol=1e-5), "logits mismatch"
    assert jnp.allclose(logits_flat, ref_logits_flat, atol=1e-5), \
        "flat logits mismatch"
    assert jnp.allclose(loss, ref_loss, atol=1e-5), "loss mismatch"

    print("KERNEL_OK")
</pallas_src>

<mosaic_0001>
module attributes {stable_mosaic.version = 11 : i64} {
  func.func @bigram_logits_kernel(%arg0: i32, %arg1: memref<16xi32, #tpu.memory_space<smem>>, %arg2: memref<128x128xf32, #tpu.memory_space<vmem>>, %arg3: memref<16x128xf32, #tpu.memory_space<vmem>>) attributes {dimension_semantics = [#tpu.dimension_semantics<parallel>], iteration_bounds = array<i64: 1>, scalar_prefetch = 1 : i64, scratch_operands = 0 : i64, tpu.core_type = #tpu.core_type<tc>, window_params = [{pipeline_mode = #tpu.pipeline_mode<synchronous>, transform_indices = @transform_0, window_bounds = array<i64: 128, 128>}, {transform_indices = @transform_1, window_bounds = array<i64: 16, 128>}]} {
    %c16_i32 = arith.constant 16 : i32
    %0 = arith.muli %arg0, %c16_i32 : i32
    %c0_i32 = arith.constant 0 : i32
    %c16_i32_0 = arith.constant 16 : i32
    %1 = arith.addi %c0_i32, %c16_i32_0 : i32
    %c1_i32 = arith.constant 1 : i32
    scf.for %arg4 = %c0_i32 to %1 step %c1_i32  : i32 {
      %2 = arith.addi %0, %arg4 : i32
      %3 = arith.index_cast %2 : i32 to index
      %4 = memref.load %arg1[%3] : memref<16xi32, #tpu.memory_space<smem>>
      %5 = arith.index_cast %4 : i32 to index
      %c0 = arith.constant 0 : index
      %6 = vector.load %arg2[%5, %c0] : memref<128x128xf32, #tpu.memory_space<vmem>>, vector<1x128xf32>
      %7 = arith.index_cast %arg4 : i32 to index
      %c0_2 = arith.constant 0 : index
      %8 = vector.load %arg3[%7, %c0_2] : memref<16x128xf32, #tpu.memory_space<vmem>>, vector<1x128xf32>
      tpu.vector_store %arg3[%7, %c0_2], %6 {strides = array<i32>} : memref<16x128xf32, #tpu.memory_space<vmem>>, vector<1x128xf32>,
    }
    %c16_i32_1 = arith.constant 16 : i32
    return
  }
  func.func @transform_0(%arg0: i32, %arg1: memref<16xi32, #tpu.memory_space<smem>>) -> (i32, i32) {
    %c0_i32 = arith.constant 0 : i32
    %c0_i32_0 = arith.constant 0 : i32
    %c0_i32_1 = arith.constant 0 : i32
    return %c0_i32, %c0_i32_0 : i32, i32
  }
  func.func @transform_1(%arg0: i32, %arg1: memref<16xi32, #tpu.memory_space<smem>>) -> (i32, i32) {
    %c0_i32 = arith.constant 0 : i32
    %c0_i32_0 = arith.constant 0 : i32
    return %arg0, %c0_i32 : i32, i32
  }
}

</mosaic_0001>

<llo_original>
// kernel: tpu_custom_call.1
$region0: #{tpu_custom_call.1}
  #allocation0 [shape = 'u32[]', space=smem, size = 0x4, offset = 0x4, fixed_abs, tag = 'smem constant byte address 0x4 - core index']
  #allocation1 [shape = 'u32[144,128]{1,0:T(1,128)}', space=vmem, size = 0x12000, scoped, tag = 'internal scratch']
  #allocation2 [shape = 's32[1]{0}', space=sflag, size = 0x4, scoped, tag = 'scoped memory for tpu_custom_call.1']
  #allocation3 [shape = 'u8[512]{0}', space=smem, size = 0x200, scoped, tag = 'prefetched SMEM operand 0']
  %s0 = inlined_call_operand.hbm [shape: s32[16], index: 0, kind: input, shape index: {}]
  %s1 = inlined_call_operand.hbm [shape: f32[128,128], index: 1, kind: input, shape index: {}]
  %s2 = inlined_call_operand.hbm [shape: f32[16,128], index: 2, kind: output, shape index: {}]
  %s3 = sld [smem:[#allocation0]]
  $region25: #{tpu_custom_call.1} parent=0
    _
  %s5 = ssub.s32 1, %s3
  %s6 = scalar_select 0, %s5, %s3
  %8 = dma.hbm_to_smem %s0, 16, [#allocation3], [#allocation2]
  %9 = dma.done [#allocation2], 16
  %10 = sfence
  $region1: #{tpu_custom_call.1} parent=0
    #allocation4 [shape = 'u8[65536]{0}', space=vmem, size = 0x10000, scoped, tag = 'input window, operand 1, single buffered']
    #allocation5 [shape = 's32[1]{0}', space=sflag, size = 0x4, scoped, tag = 'scoped memory for tpu_custom_call.1']
    #allocation6 [shape = 's32[1]{0}', space=sflag, size = 0x4, scoped, tag = 'scoped memory for tpu_custom_call.1']
    #allocation7 [shape = 'u8[8192]{0}', space=vmem, size = 0x2000, scoped, tag = 'output window, operand 0, single buffered']
    %11 = vsyncpa [#allocation5], 0
    %12 = vsyncpa [#allocation6], 0
    // Predicated region
    $region2: #{tpu_custom_call.1} parent=1 // pred_check
      _
    $region3: #{tpu_custom_call.1} parent=1 // pred_check_branch
      %14 = sbr.rel (0) target = $region5
    $region4: #{tpu_custom_call.1} parent=1 // pred_region
      %s16 = ssub.s32 2048, 2048
      %17 = vsyncadd [#allocation5], %s16
      %s18 = sshll.u32 [#allocation4], 4
      %s19 = int_to_ptr.vmem [resolvable:$true] %s18
      %24 = dma.hbm_to_vmem [thread:$0]  %s1, 2048, %s19, [#allocation5], 128, 128, 8
    $region5: #{tpu_custom_call.1} parent=1 // pred_fallthru
      _
    // Predicated region
    $region6: #{tpu_custom_call.1} parent=1 // pred_check
      _
    $region7: #{tpu_custom_call.1} parent=1 // pred_check_branch
      %26 = sbr.rel (0) target = $region9
    $region8: #{tpu_custom_call.1} parent=1 // pred_region
      %27 = dma.done [#allocation5], 2048
    $region9: #{tpu_custom_call.1} parent=1 // pred_fallthru
      _
    %s28 = smul.u32 0, 16
    loop: start=0, step=1, limit=16
    $region10: #{tpu_custom_call.1} parent=1 // loop_pre_header
      _
    $region11: #{tpu_custom_call.1} parent=1 // loop_header
      %s30 = sphi 0, %s34
      %p31 = scmp.ge.s32.totalorder %s30, 16
    $region12: #{tpu_custom_call.1} parent=1 // loop_header_branch
      %33 = sbr.rel (%p31) target = $region16
    $region13: #{tpu_custom_call.1} parent=1 // loop_body
      %s35 = sadd.s32 %s28, %s30
      %s36 = sld [smem:[#allocation3 + %s35]]
      %s37 = scalar_lea.vmem [#allocation4], %s36
      %v38 = vld [vmem:[%s37] sm:$0x1]
      %s39 = scalar_lea.vmem [#allocation7], %s30
      %40 = vst [vmem:[%s39] sm:$0x1] %v38
    $region14: #{tpu_custom_call.1} parent=1 // loop_footer
      %s34 = sadd.s32 1, %s30
    $region15: #{tpu_custom_call.1} parent=1 // loop_footer_branch
      %29 = sbr.rel target = $region11
    $region16: #{tpu_custom_call.1} parent=1 // loop_exit
      _
    // Predicated region
    $region17: #{tpu_custom_call.1} parent=1 // pred_check
      _
    $region18: #{tpu_custom_call.1} parent=1 // pred_check_branch
      %42 = sbr.rel (0) target = $region20
    $region19: #{tpu_custom_call.1} parent=1 // pred_region
      %s44 = ssub.s32 256, 256
      %45 = vsyncadd [#allocation6], %s44
      %s46 = sshll.u32 [#allocation7], 4
      %s47 = int_to_ptr.vmem [resolvable:$true] %s46
      %52 = dma.vmem_to_hbm [thread:$0]  %s47, 256, %s2, [#allocation6], 128, 128, 8
    $region20: #{tpu_custom_call.1} parent=1 // pred_fallthru
      _
    // Predicated region
    $region21: #{tpu_custom_call.1} parent=1 // pred_check
      _
    $region22: #{tpu_custom_call.1} parent=1 // pred_check_branch
      %54 = sbr.rel (0) target = $region24
    $region23: #{tpu_custom_call.1} parent=1 // pred_region
      %55 = dma.done [#allocation6], 256
    $region24: #{tpu_custom_call.1} parent=1 // pred_fallthru
      _
    %56 = vsyncpa [#allocation5], 1
    %57 = vsyncpa [#allocation6], 1

</llo_original>
